<compile_context>
chip_gen: v7x
topology: tpu7x:2x2x1
jax: 0.10.0
libtpu: 0.0.40
codegen_flags: <defaults>
</compile_context>

<pallas_src>
import math

import jax
import jax.numpy as jnp
from jax.experimental import pallas as pl
from jax.experimental.pallas import tpu as pltpu


def _embed_kernel_fma(x_ref, w_ref, out_ref):
    # x_ref: (tm, node_dim), w_ref: (node_dim, embed_dim), node_dim small.
    # Unrolled VPU broadcast-FMAs; avoids pushing a K=2 (all-padding) matmul
    # through the MXU and keeps the vex slot free.
    x = x_ref[...].astype(jnp.float32)
    w = w_ref[...].astype(jnp.float32)
    acc = x[:, 0:1] * w[0:1, :]
    for k in range(1, w.shape[0]):          # static, tiny trip count
        acc = acc + x[:, k:k + 1] * w[k:k + 1, :]
    out_ref[...] = acc.astype(out_ref.dtype)


def _embed_kernel_dot(x_ref, w_ref, out_ref):
    out_ref[...] = jnp.dot(
        x_ref[...], w_ref[...], preferred_element_type=jnp.float32
    ).astype(out_ref.dtype)


def _choose_tile_rows(M, tile_rows):
    """Row tile: multiple of 8 sublanes, large enough to amortize per-step
    overhead, but keeping >= 2 grid steps when M is big (v7x megacore)."""
    m8 = max(8, ((M + 7) // 8) * 8)
    tm = min(tile_rows, m8)
    if m8 >= 2 * 1024:
        # Cap at ~ceil(M/2) rounded to 8 so the "parallel" grid axis has at
        # least 2 steps, but never shrink a step below 1024 rows.
        half = ((m8 + 1) // 2 + 7) // 8 * 8
        tm = min(tm, max(1024, half))
    return max(8, ((tm + 7) // 8) * 8)


def embedding_net_loc(x, weight, *, tile_rows=4096, out_dtype=None):
    """Pallas implementation of EmbeddingNet_Loc.forward.

    x:      (..., node_dim)
    weight: (embedding_dim, node_dim)   -- PyTorch nn.Linear weight layout
    returns (..., embedding_dim) = x @ weight.T  (no bias)
    """
    x = jnp.asarray(x)
    weight = jnp.asarray(weight)
    node_dim = x.shape[-1]
    embed_dim, w_k = weight.shape
    assert w_k == node_dim, "weight must be (embedding_dim, node_dim)"
    out_dtype = x.dtype if out_dtype is None else jnp.dtype(out_dtype)

    # One tiny transpose so the kernel sees (node_dim, embed_dim) and the
    # contraction axis is on sublanes; weight stays resident in VMEM.
    w = weight.T

    lead = x.shape[:-1]
    M = math.prod(lead) if lead else 1
    x2 = x.reshape(M, node_dim)

    tm = _choose_tile_rows(M, tile_rows)
    grid = (pl.cdiv(M, tm),)          # ragged last block handled by Pallas

    kernel = _embed_kernel_fma if node_dim <= 8 else _embed_kernel_dot

    flops = 2 * M * node_dim * embed_dim
    bytes_accessed = (M * node_dim * x2.dtype.itemsize
                      + node_dim * embed_dim * w.dtype.itemsize
                      + M * embed_dim * out_dtype.itemsize)

    out = pl.pallas_call(
        kernel,
        out_shape=jax.ShapeDtypeStruct((M, embed_dim), out_dtype),
        grid_spec=pltpu.PrefetchScalarGridSpec(
            num_scalar_prefetch=0,
            grid=grid,
            in_specs=[
                # Row tile of the flattened input (node_dim lane-padded in
                # VMEM; acceptable since node_dim is tiny and tm*512 B per
                # buffer still fits comfortably).
                pl.BlockSpec((tm, node_dim), lambda i: (i, 0)),
                # Full weight, constant index_map -> single DMA, VMEM-resident.
                pl.BlockSpec((node_dim, embed_dim), lambda i: (0, 0)),
            ],
            out_specs=pl.BlockSpec((tm, embed_dim), lambda i: (i, 0)),
        ),
        compiler_params=pltpu.CompilerParams(
            dimension_semantics=("parallel",),
            vmem_limit_bytes=32 * 1024 * 1024,
        ),
        cost_estimate=pl.CostEstimate(
            flops=flops, transcendentals=0, bytes_accessed=bytes_accessed),
    )(x2, w)

    return out.reshape(*lead, embed_dim)


def _reference(x, weight):
    """Pure-JAX reference mirroring the PyTorch forward (x @ W^T, no bias)."""
    return jnp.dot(jnp.asarray(x, jnp.float32),
                   jnp.asarray(weight, jnp.float32).T)


if __name__ == "__main__":
    # Small shapes consistent with the module: loc inputs are 2-D coordinates,
    # FER-POMO embedding_dim is 128 (lane-dense output).
    batch = 2
    graph_size = 20
    node_dim = 2
    embedding_dim = 128

    key = jax.random.PRNGKey(0)
    k_x, k_w = jax.random.split(key)

    # nn.Linear-style init: uniform(-1/sqrt(in_features), 1/sqrt(in_features)).
    stdv = 1.0 / math.sqrt(node_dim)
    weight = jax.random.uniform(
        k_w, (embedding_dim, node_dim), jnp.float32, -stdv, stdv)
    x = jax.random.uniform(k_x, (batch, graph_size, node_dim), jnp.float32)

    ref = _reference(x, weight)

    # Default (large) row tile: single grid step for this small demo.
    out = embedding_net_loc(x, weight)
    out = jax.block_until_ready(out)
    assert out.shape == (batch, graph_size, embedding_dim)
    assert jnp.allclose(out, ref, atol=1e-5, rtol=1e-5), "mismatch vs reference"

    # Small row tile: exercises multi-step grid + ragged (masked) last block,
    # with no wrapper-side pad/slice copies.
    out2 = embedding_net_loc(x, weight, tile_rows=16)
    out2 = jax.block_until_ready(out2)
    assert jnp.allclose(out2, ref, atol=1e-5, rtol=1e-5), "mismatch (tiled path)"

    print("KERNEL_OK")
</pallas_src>

<mosaic_0001>
module attributes {stable_mosaic.version = 11 : i64} {
  func.func @_embed_kernel_fma(%arg0: i32, %arg1: memref<40x2xf32, #tpu.memory_space<vmem>>, %arg2: memref<2x128xf32, #tpu.memory_space<vmem>>, %arg3: memref<40x128xf32, #tpu.memory_space<vmem>>) attributes {dimension_semantics = [#tpu.dimension_semantics<parallel>], iteration_bounds = array<i64: 1>, scalar_prefetch = 0 : i64, scratch_operands = 0 : i64, tpu.core_type = #tpu.core_type<tc>, window_params = [{transform_indices = @transform_0, window_bounds = array<i64: 40, 2>}, {pipeline_mode = #tpu.pipeline_mode<synchronous>, transform_indices = @transform_1, window_bounds = array<i64: 2, 128>}, {transform_indices = @transform_2, window_bounds = array<i64: 40, 128>}]} {
    %c0 = arith.constant 0 : index
    %c0_0 = arith.constant 0 : index
    %0 = vector.load %arg1[%c0, %c0_0] : memref<40x2xf32, #tpu.memory_space<vmem>>, vector<40x2xf32>
    %c0_1 = arith.constant 0 : index
    %c0_2 = arith.constant 0 : index
    %1 = vector.load %arg2[%c0_1, %c0_2] : memref<2x128xf32, #tpu.memory_space<vmem>>, vector<2x128xf32>
    %2 = vector.extract_strided_slice %0 {offsets = [0, 0], sizes = [40, 1], strides = [1, 1]} : vector<40x2xf32> to vector<40x1xf32>
    %3 = vector.extract_strided_slice %1 {offsets = [0, 0], sizes = [1, 128], strides = [1, 1]} : vector<2x128xf32> to vector<1x128xf32>
    %4 = vector.broadcast %2 : vector<40x1xf32> to vector<40x128xf32>
    %5 = vector.broadcast %3 : vector<1x128xf32> to vector<40x128xf32>
    %6 = arith.mulf %4, %5 : vector<40x128xf32>
    %7 = vector.extract_strided_slice %0 {offsets = [0, 1], sizes = [40, 1], strides = [1, 1]} : vector<40x2xf32> to vector<40x1xf32>
    %8 = vector.extract_strided_slice %1 {offsets = [1, 0], sizes = [1, 128], strides = [1, 1]} : vector<2x128xf32> to vector<1x128xf32>
    %9 = vector.broadcast %7 : vector<40x1xf32> to vector<40x128xf32>
    %10 = vector.broadcast %8 : vector<1x128xf32> to vector<40x128xf32>
    %11 = arith.mulf %9, %10 : vector<40x128xf32>
    %12 = arith.addf %6, %11 : vector<40x128xf32>
    %c0_3 = arith.constant 0 : index
    %c0_4 = arith.constant 0 : index
    %13 = vector.load %arg3[%c0_3, %c0_4] : memref<40x128xf32, #tpu.memory_space<vmem>>, vector<40x128xf32>
    tpu.vector_store %arg3[%c0_3, %c0_4], %12 {strides = array<i32>} : memref<40x128xf32, #tpu.memory_space<vmem>>, vector<40x128xf32>,
    return
  }
  func.func @transform_0(%arg0: i32) -> (i32, i32) {
    %c0_i32 = arith.constant 0 : i32
    %c0_i32_0 = arith.constant 0 : i32
    return %arg0, %c0_i32 : i32, i32
  }
  func.func @transform_1(%arg0: i32) -> (i32, i32) {
    %c0_i32 = arith.constant 0 : i32
    %c0_i32_0 = arith.constant 0 : i32
    %c0_i32_1 = arith.constant 0 : i32
    return %c0_i32, %c0_i32_0 : i32, i32
  }
  func.func @transform_2(%arg0: i32) -> (i32, i32) {
    %c0_i32 = arith.constant 0 : i32
    %c0_i32_0 = arith.constant 0 : i32
    return %arg0, %c0_i32 : i32, i32
  }
}

</mosaic_0001>

<llo_original>
// kernel: tpu_custom_call.1
$region0: #{tpu_custom_call.1}
  #allocation0 [shape = 'u32[]', space=smem, size = 0x4, offset = 0x4, fixed_abs, tag = 'smem constant byte address 0x4 - core index']
  #allocation1 [shape = 'u32[144,128]{1,0:T(1,128)}', space=vmem, size = 0x12000, scoped, tag = 'internal scratch']
  %s0 = inlined_call_operand.vmem [shape: f32[40,2], index: 0, kind: input, shape index: {}]
  %s1 = inlined_call_operand.vmem [shape: f32[2,128], index: 1, kind: input, shape index: {}]
  %s2 = inlined_call_operand.hbm [shape: f32[40,128], index: 2, kind: output, shape index: {}]
  %s3 = sld [smem:[#allocation0]]
  $region18: #{tpu_custom_call.1} parent=0
    _
  %s5 = ssub.s32 1, %s3
  %s6 = scalar_select 0, %s5, %s3
  $region1: #{tpu_custom_call.1} parent=0
    #allocation2 [shape = 'u8[20480]{0}', space=vmem, size = 0x5000, scoped, tag = 'output window, operand 0, single buffered']
    #allocation3 [shape = 's32[1]{0}', space=sflag, size = 0x4, scoped, tag = 'scoped memory for tpu_custom_call.1']
    %7 = vsyncpa [#allocation3], 0
    // Predicated region
    $region2: #{tpu_custom_call.1} parent=1 // pred_check
      _
    $region3: #{tpu_custom_call.1} parent=1 // pred_check_branch
      %9 = sbr.rel (0) target = $region5
    $region4: #{tpu_custom_call.1} parent=1 // pred_region
      _
    $region5: #{tpu_custom_call.1} parent=1 // pred_fallthru
      _
    // Predicated region
    $region6: #{tpu_custom_call.1} parent=1 // pred_check
      _
    $region7: #{tpu_custom_call.1} parent=1 // pred_check_branch
      %11 = sbr.rel (0) target = $region9
    $region8: #{tpu_custom_call.1} parent=1 // pred_region
      _
    $region9: #{tpu_custom_call.1} parent=1 // pred_fallthru
      _
    %v12 = vld [vmem:[%s0] sm:$0xff]
    %v13 = vld [vmem:[%s0 + $0x8] sm:$0xff]
    %v14 = vld [vmem:[%s0 + $0x10] sm:$0xff]
    %v15 = vld [vmem:[%s0 + $0x18] sm:$0xff]
    %v16 = vld [vmem:[%s0 + $0x20] sm:$0xff]
    %v17 = vld [vmem:[%s1] sm:$0x3]
    %19 = vset.pattern.permute.xlu0 0
    %20 = vperm.xlu0 %19, %v12
    %v21 = vpop.permute.xlu0 %20
    %24 = vset.pattern.permute.xlu0 0
    %25 = vperm.xlu0 %24, %v13
    %v26 = vpop.permute.xlu0 %25
    %29 = vset.pattern.permute.xlu0 0
    %30 = vperm.xlu0 %29, %v14
    %v31 = vpop.permute.xlu0 %30
    %34 = vset.pattern.permute.xlu0 0
    %35 = vperm.xlu0 %34, %v15
    %v36 = vpop.permute.xlu0 %35
    %39 = vset.pattern.permute.xlu0 0
    %40 = vperm.xlu0 %39, %v16
    %v41 = vpop.permute.xlu0 %40
    %v43 = vlaneseq
    %v44 = vshrl.u32 %v43, 7
    %v45 = vsub.s32 0, %v44
    %v46 = vrot.slane %v17, %v45
    %v47 = vmul.f32 %v21, %v46
    %v48 = vmul.f32 %v26, %v46
    %v49 = vmul.f32 %v31, %v46
    %v50 = vmul.f32 %v36, %v46
    %v51 = vmul.f32 %v41, %v46
    %52 = vset.pattern.permute.xlu0 1
    %53 = vperm.xlu0 %52, %v12
    %v54 = vpop.permute.xlu0 %53
    %56 = vset.pattern.permute.xlu0 1
    %57 = vperm.xlu0 %56, %v13
    %v58 = vpop.permute.xlu0 %57
    %60 = vset.pattern.permute.xlu0 1
    %61 = vperm.xlu0 %60, %v14
    %v62 = vpop.permute.xlu0 %61
    %64 = vset.pattern.permute.xlu0 1
    %65 = vperm.xlu0 %64, %v15
    %v66 = vpop.permute.xlu0 %65
    %68 = vset.pattern.permute.xlu0 1
    %69 = vperm.xlu0 %68, %v16
    %v70 = vpop.permute.xlu0 %69
    %v72 = vlaneseq
    %v73 = vshrl.u32 %v72, 7
    %v74 = vsub.s32 1, %v73
    %v75 = vrot.slane %v17, %v74
    %v76 = vmul.f32 %v54, %v75
    %v77 = vmul.f32 %v58, %v75
    %v78 = vmul.f32 %v62, %v75
    %v79 = vmul.f32 %v66, %v75
    %v80 = vmul.f32 %v70, %v75
    %v81 = vadd.f32 %v47, %v76
    %v82 = vadd.f32 %v48, %v77
    %v83 = vadd.f32 %v49, %v78
    %v84 = vadd.f32 %v50, %v79
    %v85 = vadd.f32 %v51, %v80
    %86 = vst [vmem:[#allocation2] sm:$0xff] %v81
    %87 = vst [vmem:[#allocation2 + $0x8] sm:$0xff] %v82
    %88 = vst [vmem:[#allocation2 + $0x10] sm:$0xff] %v83
    %89 = vst [vmem:[#allocation2 + $0x18] sm:$0xff] %v84
    %90 = vst [vmem:[#allocation2 + $0x20] sm:$0xff] %v85
    // Predicated region
    $region10: #{tpu_custom_call.1} parent=1 // pred_check
      _
    $region11: #{tpu_custom_call.1} parent=1 // pred_check_branch
      %92 = sbr.rel (0) target = $region13
    $region12: #{tpu_custom_call.1} parent=1 // pred_region
      %s94 = ssub.s32 640, 640
      %95 = vsyncadd [#allocation3], %s94
      %s96 = sshll.u32 [#allocation2], 4
      %s97 = int_to_ptr.vmem [resolvable:$true] %s96
      %102 = dma.vmem_to_hbm [thread:$0]  %s97, 640, %s2, [#allocation3], 128, 128, 8
    $region13: #{tpu_custom_call.1} parent=1 // pred_fallthru
      _
    // Predicated region
    $region14: #{tpu_custom_call.1} parent=1 // pred_check
      _
    $region15: #{tpu_custom_call.1} parent=1 // pred_check_branch
      %104 = sbr.rel (0) target = $region17
    $region16: #{tpu_custom_call.1} parent=1 // pred_region
      %105 = dma.done [#allocation3], 640
    $region17: #{tpu_custom_call.1} parent=1 // pred_fallthru
      _
    %106 = vsyncpa [#allocation3], 1

</llo_original>
